<compile_context>
chip_gen: v7x
topology: tpu7x:2x2x1
jax: 0.10.0
libtpu: 0.0.40
codegen_flags: <defaults>
</compile_context>

<pallas_src>
import jax
import jax.numpy as jnp
from jax.experimental import pallas as pl
from jax.experimental.pallas import tpu as pltpu

# ----- problem sizes (small, consistent with the module) -----
B       = 2      # batch
IN_CH   = 16     # in_chan (feats)
HID_CH  = 32     # hid_chan
SPK_CH  = 16     # spk_vec_chan
T       = 128    # seq length
K       = 3      # kernel_size
DIL     = 2      # dilation
PAD     = 2      # padding
T_OUT   = T + 2 * PAD - DIL * (K - 1)   # = 128 ("same"-length conv)
EPS     = 1e-8   # asteroid gLN epsilon
assert T_OUT == T


def sepconv_kernel(x_ref, w_ref, cp_ref, alpha_ref, o_ref):
    # x_ref    : (B, IN_CH, T)       input (lane-dense, T = 128)
    # w_ref    : (HID_CH, K*IN_CH)   fused conv taps, tap-major columns
    # cp_ref   : (B, HID_CH, 4)      [film_mul, film_add(+bias folded), gamma, beta]
    # alpha_ref: (1,)                PReLU slope (SMEM scalar)
    # o_ref    : (B, HID_CH, T_OUT)

    # --- pack both batch elements along lanes: [IN_CH, B*T] (aligned concat) ---
    xw = jnp.concatenate([x_ref[b] for b in range(B)], axis=1)      # [IN, B*T]

    # Local (per-batch) time index of every lane; T is a power of two so the
    # modulo is a cheap mask.
    lane = jax.lax.broadcasted_iota(jnp.int32, (IN_CH, B * T), 1)
    tloc = lane % T

    # --- build the K shifted taps lane-dense: XLU rolls + edge masks ---
    taps = []
    for k in range(K):                                              # static unroll
        s = PAD - k * DIL                                           # +2, 0, -2
        if s == 0:
            taps.append(xw)
        elif s > 0:                                                 # needs x[t - s]
            taps.append(jnp.where(tloc >= s,
                                  pltpu.roll(xw, shift=s, axis=1), 0.0))
        else:                                                       # needs x[t + |s|]
            taps.append(jnp.where(tloc < T + s,
                                  pltpu.roll(xw, shift=B * T + s, axis=1), 0.0))
    x_stack = jnp.concatenate(taps, axis=0)                         # [K*IN, B*T]

    # --- dilated Conv1d for the WHOLE batch: one MXU matmul (32,48)@(48,256) ---
    conv = jnp.dot(w_ref[...], x_stack, preferred_element_type=jnp.float32)

    alpha = alpha_ref[0]
    inv_n = 1.0 / (HID_CH * T_OUT)

    # --- per-batch epilogue on aligned 128-lane slices ---
    for b in range(B):                                              # static unroll
        c = conv[:, b * T: (b + 1) * T]                             # [HID, T]
        cp = cp_ref[b]                                              # [HID, 4]
        film_mul = cp[:, 0:1]
        film_add = cp[:, 1:2]
        gamma = cp[:, 2:3]
        beta = cp[:, 3:4]

        # FiLM conditioning (conv bias already folded into film_add)
        cond = film_mul * c + film_add

        # PReLU
        y = jnp.where(cond >= 0, cond, alpha * cond)

        # gLN over (channel, time): one-pass moments + rsqrt on the EUP
        mean = jnp.sum(y) * inv_n
        var = jnp.sum(y * y) * inv_n - mean * mean
        inv_std = jax.lax.rsqrt(var + EPS)
        o_ref[b] = gamma * ((y - mean) * inv_std) + beta


def sepconv1d_block(x, spk_vec, params):
    """x: [B, IN_CH, T], spk_vec: [B, SPK_CH] -> [B, HID_CH, T_OUT]"""
    (w_taps, b_conv, w_mul, b_mul, w_add, b_add, alpha, gamma, beta) = params

    # Fused conv weight [HID, K*IN]; tap-major columns matching the in-kernel
    # concatenation order of the shifted inputs.
    w_fused = jnp.concatenate([w_taps[k] for k in range(K)], axis=1)

    # Precompute FiLM outside the kernel (tiny [B, HID] matmuls);
    # fold the conv bias into the additive term: mul*(conv+b) + add.
    film_mul = spk_vec @ w_mul.T + b_mul[:, 0]                        # [B, HID]
    film_add = spk_vec @ w_add.T + b_add[:, 0] + film_mul * b_conv[None, :, 0]
    gB = jnp.broadcast_to(gamma[:, 0], (B, HID_CH))
    bB = jnp.broadcast_to(beta[:, 0], (B, HID_CH))
    chan_params = jnp.stack([film_mul, film_add, gB, bB], axis=-1)    # [B, HID, 4]
    alpha_s = alpha.reshape(1)                                        # SMEM scalar

    return pl.pallas_call(
        sepconv_kernel,
        out_shape=jax.ShapeDtypeStruct((B, HID_CH, T_OUT), jnp.float32),
        grid_spec=pltpu.PrefetchScalarGridSpec(
            num_scalar_prefetch=0,
            grid=(1,),
            in_specs=[
                pl.BlockSpec((B, IN_CH, T),        lambda i: (0, 0, 0)),  # x
                pl.BlockSpec((HID_CH, K * IN_CH),  lambda i: (0, 0)),     # fused conv W
                pl.BlockSpec((B, HID_CH, 4),       lambda i: (0, 0, 0)),  # channel params
                pl.BlockSpec(memory_space=pltpu.MemorySpace.SMEM),        # PReLU alpha
            ],
            out_specs=pl.BlockSpec((B, HID_CH, T_OUT), lambda i: (0, 0, 0)),
        ),
        compiler_params=pltpu.CompilerParams(dimension_semantics=("arbitrary",)),
    )(x, w_fused, chan_params, alpha_s)


def make_params(key):
    """Deterministic synthetic parameters (kaiming-uniform-style ranges)."""
    ks = jax.random.split(key, 6)
    # Conv1d weight: torch layout [HID, IN, K]; stored per-tap as [K, HID, IN].
    conv_bound = (6.0 / (IN_CH * K)) ** 0.5
    w_conv = jax.random.uniform(ks[0], (HID_CH, IN_CH, K), jnp.float32,
                                -conv_bound, conv_bound)
    w_taps = jnp.transpose(w_conv, (2, 0, 1))                  # [K, HID, IN]
    b_conv = jax.random.uniform(ks[1], (HID_CH, 1), jnp.float32,
                                -1.0 / (IN_CH * K) ** 0.5, 1.0 / (IN_CH * K) ** 0.5)
    lin_bound = (6.0 / SPK_CH) ** 0.5
    w_mul = jax.random.uniform(ks[2], (HID_CH, SPK_CH), jnp.float32,
                               -lin_bound, lin_bound)
    b_mul = jax.random.uniform(ks[3], (HID_CH, 1), jnp.float32,
                               -1.0 / SPK_CH ** 0.5, 1.0 / SPK_CH ** 0.5)
    w_add = jax.random.uniform(ks[4], (HID_CH, SPK_CH), jnp.float32,
                               -lin_bound, lin_bound)
    b_add = jax.random.uniform(ks[5], (HID_CH, 1), jnp.float32,
                               -1.0 / SPK_CH ** 0.5, 1.0 / SPK_CH ** 0.5)
    alpha = jnp.full((1, 1), 0.25, jnp.float32)                # PReLU default init
    gamma = jnp.ones((HID_CH, 1), jnp.float32)                 # gLN init
    beta = jnp.zeros((HID_CH, 1), jnp.float32)
    return (w_taps, b_conv, w_mul, b_mul, w_add, b_add, alpha, gamma, beta)


def reference_forward(x, spk_vec, params):
    """Pure-JAX reference mirroring the PyTorch forward."""
    (w_taps, b_conv, w_mul, b_mul, w_add, b_add, alpha, gamma, beta) = params
    xp = jnp.pad(x, ((0, 0), (0, 0), (PAD, PAD)))
    conv = jnp.zeros((B, HID_CH, T_OUT), jnp.float32)
    for k in range(K):
        conv = conv + jnp.einsum('oi,bit->bot', w_taps[k],
                                 xp[:, :, k * DIL: k * DIL + T_OUT])
    conv = conv + b_conv[None, :, 0, None]
    mul = spk_vec @ w_mul.T + b_mul[:, 0]
    add = spk_vec @ w_add.T + b_add[:, 0]
    cond = mul[:, :, None] * conv + add[:, :, None]
    a = alpha[0, 0]
    y = jnp.where(cond >= 0, cond, a * cond)
    mean = y.mean(axis=(1, 2), keepdims=True)
    var = ((y - mean) ** 2).mean(axis=(1, 2), keepdims=True)
    normed = (y - mean) / jnp.sqrt(var + EPS)
    return gamma[None, :, 0, None] * normed + beta[None, :, 0, None]


if __name__ == "__main__":
    key = jax.random.PRNGKey(0)
    kx, ks, kp = jax.random.split(key, 3)
    x = jax.random.normal(kx, (B, IN_CH, T), jnp.float32)
    spk_vec = jax.random.normal(ks, (B, SPK_CH), jnp.float32)
    params = make_params(kp)

    out = sepconv1d_block(x, spk_vec, params)
    out = jax.block_until_ready(out)

    ref = reference_forward(x, spk_vec, params)
    assert out.shape == (B, HID_CH, T_OUT), out.shape
    assert jnp.allclose(out, ref, atol=1e-4, rtol=1e-4), \
        float(jnp.max(jnp.abs(out - ref)))

    print("KERNEL_OK")
</pallas_src>

<mosaic_0001>
module attributes {stable_mosaic.version = 11 : i64} {
  func.func @sepconv_kernel(%arg0: i32, %arg1: memref<2x16x128xf32, #tpu.memory_space<vmem>>, %arg2: memref<32x48xf32, #tpu.memory_space<vmem>>, %arg3: memref<2x32x4xf32, #tpu.memory_space<vmem>>, %arg4: memref<1xf32, #tpu.memory_space<smem>>, %arg5: memref<2x32x128xf32, #tpu.memory_space<vmem>>) attributes {dimension_semantics = [#tpu.dimension_semantics<arbitrary>], iteration_bounds = array<i64: 1>, scalar_prefetch = 0 : i64, scratch_operands = 0 : i64, tpu.core_type = #tpu.core_type<tc>, window_params = [{pipeline_mode = #tpu.pipeline_mode<synchronous>, transform_indices = @transform_0, window_bounds = array<i64: 2, 16, 128>}, {pipeline_mode = #tpu.pipeline_mode<synchronous>, transform_indices = @transform_1, window_bounds = array<i64: 32, 48>}, {pipeline_mode = #tpu.pipeline_mode<synchronous>, transform_indices = @transform_2, window_bounds = array<i64: 2, 32, 4>}, {transform_indices = @transform_3, window_bounds = array<i64: 1>}, {pipeline_mode = #tpu.pipeline_mode<synchronous>, transform_indices = @transform_4, window_bounds = array<i64: 2, 32, 128>}]} {
    %c0 = arith.constant 0 : index
    %c0_0 = arith.constant 0 : index
    %c0_1 = arith.constant 0 : index
    %0 = vector.load %arg1[%c0, %c0_0, %c0_1] : memref<2x16x128xf32, #tpu.memory_space<vmem>>, vector<1x16x128xf32>
    %1 = vector.shape_cast %0 : vector<1x16x128xf32> to vector<16x128xf32>
    %c1 = arith.constant 1 : index
    %c0_2 = arith.constant 0 : index
    %c0_3 = arith.constant 0 : index
    %2 = vector.load %arg1[%c1, %c0_2, %c0_3] : memref<2x16x128xf32, #tpu.memory_space<vmem>>, vector<1x16x128xf32>
    %3 = vector.shape_cast %2 : vector<1x16x128xf32> to vector<16x128xf32>
    %4 = tpu.concatenate %1, %3 in 1 : vector<16x128xf32>, vector<16x128xf32> -> vector<16x256xf32>
    %5 = tpu.iota {dimensions = array<i32: 1>} : vector<16x256xi32>
    %c128_i32 = arith.constant 128 : i32
    %c0_i32 = arith.constant 0 : i32
    %6 = arith.cmpi eq, %c128_i32, %c0_i32 : i32
    %c1_i32 = arith.constant 1 : i32
    %7 = arith.select %6, %c1_i32, %c128_i32 : i32
    %8 = vector.broadcast %7 : i32 to vector<16x256xi32>
    %9 = arith.remsi %5, %8 : vector<16x256xi32>
    %c0_i32_4 = arith.constant 0 : i32
    %10 = vector.broadcast %c0_i32_4 : i32 to vector<16x256xi32>
    %11 = arith.cmpi ne, %9, %10 : vector<16x256xi32>
    %c0_i32_5 = arith.constant 0 : i32
    %12 = vector.broadcast %c0_i32_5 : i32 to vector<16x256xi32>
    %13 = arith.cmpi slt, %9, %12 : vector<16x256xi32>
    %c0_i32_6 = arith.constant 0 : i32
    %14 = arith.cmpi slt, %7, %c0_i32_6 : i32
    %15 = vector.broadcast %14 : i1 to vector<16x256xi1>
    %16 = vector.broadcast %15 : vector<16x256xi1> to vector<16x256xi1>
    %17 = arith.xori %13, %16 : vector<16x256xi1>
    %18 = arith.andi %17, %11 : vector<16x256xi1>
    %19 = vector.broadcast %7 : i32 to vector<16x256xi32>
    %20 = arith.addi %9, %19 : vector<16x256xi32>
    %21 = arith.select %18, %20, %9 : vector<16x256xi1>, vector<16x256xi32>
    %c2_i32 = arith.constant 2 : i32
    %22 = vector.broadcast %c2_i32 : i32 to vector<16x256xi32>
    %23 = arith.cmpi sge, %21, %22 : vector<16x256xi32>
    %c2_i32_7 = arith.constant 2 : i32
    %24 = tpu.dynamic_rotate %4 by %c2_i32_7 dim 1 : vector<16x256xf32>, i32 -> vector<16x256xf32>
    %cst = arith.constant 0.000000e+00 : f32
    %25 = vector.broadcast %cst : f32 to vector<16x256xf32>
    %26 = arith.select %23, %24, %25 : vector<16x256xi1>, vector<16x256xf32>
    %c126_i32 = arith.constant 126 : i32
    %27 = vector.broadcast %c126_i32 : i32 to vector<16x256xi32>
    %28 = arith.cmpi slt, %21, %27 : vector<16x256xi32>
    %c254_i32 = arith.constant 254 : i32
    %29 = tpu.dynamic_rotate %4 by %c254_i32 dim 1 : vector<16x256xf32>, i32 -> vector<16x256xf32>
    %cst_8 = arith.constant 0.000000e+00 : f32
    %30 = vector.broadcast %cst_8 : f32 to vector<16x256xf32>
    %31 = arith.select %28, %29, %30 : vector<16x256xi1>, vector<16x256xf32>
    %32 = tpu.concatenate %26, %4, %31 in 0 : vector<16x256xf32>, vector<16x256xf32>, vector<16x256xf32> -> vector<48x256xf32>
    %c0_9 = arith.constant 0 : index
    %c0_10 = arith.constant 0 : index
    %33 = vector.load %arg2[%c0_9, %c0_10] : memref<32x48xf32, #tpu.memory_space<vmem>>, vector<32x48xf32>
    %cst_11 = arith.constant dense<0.000000e+00> : vector<32x256xf32>
    %34 = tpu.matmul %33, %32, %cst_11 {dimension_numbers = #tpu.dot_dimension_numbers<[1], [0], [0], [1], [0, 0, 1, 1], [], []>} : vector<32x48xf32>, vector<48x256xf32>, vector<32x256xf32> -> vector<32x256xf32>
    %c0_12 = arith.constant 0 : index
    %35 = memref.load %arg4[%c0_12] : memref<1xf32, #tpu.memory_space<smem>>
    %36 = vector.extract_strided_slice %34 {offsets = [0, 0], sizes = [32, 128], strides = [1, 1]} : vector<32x256xf32> to vector<32x128xf32>
    %c0_13 = arith.constant 0 : index
    %c0_14 = arith.constant 0 : index
    %c0_15 = arith.constant 0 : index
    %37 = vector.load %arg3[%c0_13, %c0_14, %c0_15] : memref<2x32x4xf32, #tpu.memory_space<vmem>>, vector<1x32x4xf32>
    %38 = vector.shape_cast %37 : vector<1x32x4xf32> to vector<32x4xf32>
    %39 = vector.extract_strided_slice %38 {offsets = [0, 0], sizes = [32, 1], strides = [1, 1]} : vector<32x4xf32> to vector<32x1xf32>
    %40 = vector.extract_strided_slice %38 {offsets = [0, 1], sizes = [32, 1], strides = [1, 1]} : vector<32x4xf32> to vector<32x1xf32>
    %41 = vector.extract_strided_slice %38 {offsets = [0, 2], sizes = [32, 1], strides = [1, 1]} : vector<32x4xf32> to vector<32x1xf32>
    %42 = vector.extract_strided_slice %38 {offsets = [0, 3], sizes = [32, 1], strides = [1, 1]} : vector<32x4xf32> to vector<32x1xf32>
    %43 = vector.broadcast %39 : vector<32x1xf32> to vector<32x128xf32>
    %44 = arith.mulf %43, %36 : vector<32x128xf32>
    %45 = vector.broadcast %40 : vector<32x1xf32> to vector<32x128xf32>
    %46 = arith.addf %44, %45 : vector<32x128xf32>
    %cst_16 = arith.constant 0.000000e+00 : f32
    %47 = vector.broadcast %cst_16 : f32 to vector<32x128xf32>
    %48 = arith.cmpf oge, %46, %47 : vector<32x128xf32>
    %49 = vector.broadcast %35 : f32 to vector<32x128xf32>
    %50 = arith.mulf %49, %46 : vector<32x128xf32>
    %51 = arith.select %48, %46, %50 : vector<32x128xi1>, vector<32x128xf32>
    %52 = vector.shape_cast %51 : vector<32x128xf32> to vector<1x32x128xf32>
    %cst_17 = arith.constant dense<0.000000e+00> : vector<1xf32>
    %53 = vector.multi_reduction <add>, %52, %cst_17 [1, 2] : vector<1x32x128xf32> to vector<1xf32>
    %54 = vector.shape_cast %53 : vector<1xf32> to vector<1x1x1xf32>
    %55 = vector.extract %54[0, 0, 0] : f32 from vector<1x1x1xf32>
    %cst_18 = arith.constant 2.44140625E-4 : f32
    %56 = arith.mulf %55, %cst_18 : f32
    %57 = arith.mulf %51, %51 : vector<32x128xf32>
    %58 = vector.shape_cast %57 : vector<32x128xf32> to vector<1x32x128xf32>
    %cst_19 = arith.constant dense<0.000000e+00> : vector<1xf32>
    %59 = vector.multi_reduction <add>, %58, %cst_19 [1, 2] : vector<1x32x128xf32> to vector<1xf32>
    %60 = vector.shape_cast %59 : vector<1xf32> to vector<1x1x1xf32>
    %61 = vector.extract %60[0, 0, 0] : f32 from vector<1x1x1xf32>
    %cst_20 = arith.constant 2.44140625E-4 : f32
    %62 = arith.mulf %61, %cst_20 : f32
    %63 = arith.mulf %56, %56 : f32
    %64 = arith.subf %62, %63 : f32
    %cst_21 = arith.constant 9.99999993E-9 : f32
    %65 = arith.addf %64, %cst_21 : f32
    %66 = math.rsqrt %65 : f32
    %67 = vector.broadcast %56 : f32 to vector<32x128xf32>
    %68 = arith.subf %51, %67 : vector<32x128xf32>
    %69 = vector.broadcast %66 : f32 to vector<32x128xf32>
    %70 = arith.mulf %68, %69 : vector<32x128xf32>
    %71 = vector.broadcast %41 : vector<32x1xf32> to vector<32x128xf32>
    %72 = arith.mulf %71, %70 : vector<32x128xf32>
    %73 = vector.broadcast %42 : vector<32x1xf32> to vector<32x128xf32>
    %74 = arith.addf %72, %73 : vector<32x128xf32>
    %c0_22 = arith.constant 0 : index
    %c0_23 = arith.constant 0 : index
    %c0_24 = arith.constant 0 : index
    %75 = vector.load %arg5[%c0_22, %c0_23, %c0_24] : memref<2x32x128xf32, #tpu.memory_space<vmem>>, vector<1x32x128xf32>
    %76 = vector.shape_cast %75 : vector<1x32x128xf32> to vector<32x128xf32>
    %77 = vector.shape_cast %74 : vector<32x128xf32> to vector<1x32x128xf32>
    tpu.vector_store %arg5[%c0_22, %c0_23, %c0_24], %77 {strides = array<i32>} : memref<2x32x128xf32, #tpu.memory_space<vmem>>, vector<1x32x128xf32>,
    %78 = vector.extract_strided_slice %34 {offsets = [0, 128], sizes = [32, 128], strides = [1, 1]} : vector<32x256xf32> to vector<32x128xf32>
    %c1_25 = arith.constant 1 : index
    %c0_26 = arith.constant 0 : index
    %c0_27 = arith.constant 0 : index
    %79 = vector.load %arg3[%c1_25, %c0_26, %c0_27] : memref<2x32x4xf32, #tpu.memory_space<vmem>>, vector<1x32x4xf32>
    %80 = vector.shape_cast %79 : vector<1x32x4xf32> to vector<32x4xf32>
    %81 = vector.extract_strided_slice %80 {offsets = [0, 0], sizes = [32, 1], strides = [1, 1]} : vector<32x4xf32> to vector<32x1xf32>
    %82 = vector.extract_strided_slice %80 {offsets = [0, 1], sizes = [32, 1], strides = [1, 1]} : vector<32x4xf32> to vector<32x1xf32>
    %83 = vector.extract_strided_slice %80 {offsets = [0, 2], sizes = [32, 1], strides = [1, 1]} : vector<32x4xf32> to vector<32x1xf32>
    %84 = vector.extract_strided_slice %80 {offsets = [0, 3], sizes = [32, 1], strides = [1, 1]} : vector<32x4xf32> to vector<32x1xf32>
    %85 = vector.broadcast %81 : vector<32x1xf32> to vector<32x128xf32>
    %86 = arith.mulf %85, %78 : vector<32x128xf32>
    %87 = vector.broadcast %82 : vector<32x1xf32> to vector<32x128xf32>
    %88 = arith.addf %86, %87 : vector<32x128xf32>
    %cst_28 = arith.constant 0.000000e+00 : f32
    %89 = vector.broadcast %cst_28 : f32 to vector<32x128xf32>
    %90 = arith.cmpf oge, %88, %89 : vector<32x128xf32>
    %91 = vector.broadcast %35 : f32 to vector<32x128xf32>
    %92 = arith.mulf %91, %88 : vector<32x128xf32>
    %93 = arith.select %90, %88, %92 : vector<32x128xi1>, vector<32x128xf32>
    %94 = vector.shape_cast %93 : vector<32x128xf32> to vector<1x32x128xf32>
    %cst_29 = arith.constant dense<0.000000e+00> : vector<1xf32>
    %95 = vector.multi_reduction <add>, %94, %cst_29 [1, 2] : vector<1x32x128xf32> to vector<1xf32>
    %96 = vector.shape_cast %95 : vector<1xf32> to vector<1x1x1xf32>
    %97 = vector.extract %96[0, 0, 0] : f32 from vector<1x1x1xf32>
    %cst_30 = arith.constant 2.44140625E-4 : f32
    %98 = arith.mulf %97, %cst_30 : f32
    %99 = arith.mulf %93, %93 : vector<32x128xf32>
    %100 = vector.shape_cast %99 : vector<32x128xf32> to vector<1x32x128xf32>
    %cst_31 = arith.constant dense<0.000000e+00> : vector<1xf32>
    %101 = vector.multi_reduction <add>, %100, %cst_31 [1, 2] : vector<1x32x128xf32> to vector<1xf32>
    %102 = vector.shape_cast %101 : vector<1xf32> to vector<1x1x1xf32>
    %103 = vector.extract %102[0, 0, 0] : f32 from vector<1x1x1xf32>
    %cst_32 = arith.constant 2.44140625E-4 : f32
    %104 = arith.mulf %103, %cst_32 : f32
    %105 = arith.mulf %98, %98 : f32
    %106 = arith.subf %104, %105 : f32
    %cst_33 = arith.constant 9.99999993E-9 : f32
    %107 = arith.addf %106, %cst_33 : f32
    %108 = math.rsqrt %107 : f32
    %109 = vector.broadcast %98 : f32 to vector<32x128xf32>
    %110 = arith.subf %93, %109 : vector<32x128xf32>
    %111 = vector.broadcast %108 : f32 to vector<32x128xf32>
    %112 = arith.mulf %110, %111 : vector<32x128xf32>
    %113 = vector.broadcast %83 : vector<32x1xf32> to vector<32x128xf32>
    %114 = arith.mulf %113, %112 : vector<32x128xf32>
    %115 = vector.broadcast %84 : vector<32x1xf32> to vector<32x128xf32>
    %116 = arith.addf %114, %115 : vector<32x128xf32>
    %c1_34 = arith.constant 1 : index
    %c0_35 = arith.constant 0 : index
    %c0_36 = arith.constant 0 : index
    %117 = vector.load %arg5[%c1_34, %c0_35, %c0_36] : memref<2x32x128xf32, #tpu.memory_space<vmem>>, vector<1x32x128xf32>
    %118 = vector.shape_cast %117 : vector<1x32x128xf32> to vector<32x128xf32>
    %119 = vector.shape_cast %116 : vector<32x128xf32> to vector<1x32x128xf32>
    tpu.vector_store %arg5[%c1_34, %c0_35, %c0_36], %119 {strides = array<i32>} : memref<2x32x128xf32, #tpu.memory_space<vmem>>, vector<1x32x128xf32>,
    return
  }
  func.func @transform_0(%arg0: i32) -> (i32, i32, i32) {
    %c0_i32 = arith.constant 0 : i32
    %c0_i32_0 = arith.constant 0 : i32
    %c0_i32_1 = arith.constant 0 : i32
    %c0_i32_2 = arith.constant 0 : i32
    return %c0_i32, %c0_i32_0, %c0_i32_1 : i32, i32, i32
  }
  func.func @transform_1(%arg0: i32) -> (i32, i32) {
    %c0_i32 = arith.constant 0 : i32
    %c0_i32_0 = arith.constant 0 : i32
    %c0_i32_1 = arith.constant 0 : i32
    return %c0_i32, %c0_i32_0 : i32, i32
  }
  func.func @transform_2(%arg0: i32) -> (i32, i32, i32) {
    %c0_i32 = arith.constant 0 : i32
    %c0_i32_0 = arith.constant 0 : i32
    %c0_i32_1 = arith.constant 0 : i32
    %c0_i32_2 = arith.constant 0 : i32
    return %c0_i32, %c0_i32_0, %c0_i32_1 : i32, i32, i32
  }
  func.func @transform_3(%arg0: i32) -> i32 {
    %c0_i32 = arith.constant 0 : i32
    %c0_i32_0 = arith.constant 0 : i32
    return %c0_i32 : i32
  }
  func.func @transform_4(%arg0: i32) -> (i32, i32, i32) {
    %c0_i32 = arith.constant 0 : i32
    %c0_i32_0 = arith.constant 0 : i32
    %c0_i32_1 = arith.constant 0 : i32
    %c0_i32_2 = arith.constant 0 : i32
    return %c0_i32, %c0_i32_0, %c0_i32_1 : i32, i32, i32
  }
}

</mosaic_0001>

<llo_original>
// kernel: tpu_custom_call.1
$region0: #{tpu_custom_call.1}
  #allocation0 [shape = 'u32[]', space=smem, size = 0x4, offset = 0x4, fixed_abs, tag = 'smem constant byte address 0x4 - core index']
  #allocation1 [shape = 'u32[144,128]{1,0:T(1,128)}', space=vmem, size = 0x12000, scoped, tag = 'internal scratch']
  #allocation2 [shape = 'f32[1]{0:T(128)S(6)}', space=smem, size = 0x200, scoped, tag = 'scoped memory for tpu_custom_call.1']
  %s0 = inlined_call_operand.vmem [shape: f32[2,16,128], index: 0, kind: input, shape index: {}]
  %s1 = inlined_call_operand.vmem [shape: f32[32,48], index: 1, kind: input, shape index: {}]
  %s2 = inlined_call_operand.vmem [shape: f32[2,32,4], index: 2, kind: input, shape index: {}]
  %s3 = inlined_call_operand.<no memory space> [shape: f32[1], index: 3, kind: input, shape index: {}]
  %s4 = inlined_call_operand.hbm [shape: f32[2,32,128], index: 4, kind: output, shape index: {}]
  %s5 = sld [smem:[#allocation0]]
  $region26: #{tpu_custom_call.1} parent=0
    _
  %s7 = ssub.s32 1, %s5
  %s8 = scalar_select 0, %s7, %s5
  %9 = sst [smem:[#allocation2]] %s3
  $region1: #{tpu_custom_call.1} parent=0
    #allocation3 [shape = 'u8[32768]{0}', space=vmem, size = 0x8000, scoped, tag = 'output window, operand 0, single buffered']
    #allocation4 [shape = 's32[1]{0}', space=sflag, size = 0x4, scoped, tag = 'scoped memory for tpu_custom_call.1']
    %10 = vsyncpa [#allocation4], 0
    // Predicated region
    $region2: #{tpu_custom_call.1} parent=1 // pred_check
      _
    $region3: #{tpu_custom_call.1} parent=1 // pred_check_branch
      %12 = sbr.rel (0) target = $region5
    $region4: #{tpu_custom_call.1} parent=1 // pred_region
      _
    $region5: #{tpu_custom_call.1} parent=1 // pred_fallthru
      _
    // Predicated region
    $region6: #{tpu_custom_call.1} parent=1 // pred_check
      _
    $region7: #{tpu_custom_call.1} parent=1 // pred_check_branch
      %14 = sbr.rel (0) target = $region9
    $region8: #{tpu_custom_call.1} parent=1 // pred_region
      _
    $region9: #{tpu_custom_call.1} parent=1 // pred_fallthru
      _
    // Predicated region
    $region10: #{tpu_custom_call.1} parent=1 // pred_check
      _
    $region11: #{tpu_custom_call.1} parent=1 // pred_check_branch
      %16 = sbr.rel (0) target = $region13
    $region12: #{tpu_custom_call.1} parent=1 // pred_region
      _
    $region13: #{tpu_custom_call.1} parent=1 // pred_fallthru
      _
    // Predicated region
    $region14: #{tpu_custom_call.1} parent=1 // pred_check
      _
    $region15: #{tpu_custom_call.1} parent=1 // pred_check_branch
      %18 = sbr.rel (0) target = $region17
    $region16: #{tpu_custom_call.1} parent=1 // pred_region
      _
    $region17: #{tpu_custom_call.1} parent=1 // pred_fallthru
      _
    %v19 = vld [vmem:[%s0] sm:$0xff]
    %v20 = vld [vmem:[%s0 + $0x8] sm:$0xff]
    %s21 = scalar_lea.vmem %s0, 16
    %v22 = vld [vmem:[%s21] sm:$0xff]
    %v23 = vld [vmem:[%s21 + $0x8] sm:$0xff]
    %v24 = vlaneseq
    %v25 = vand.u32 %v24, 127
    %v26 = vadd.s32 %v25, 128
    %vm27 = vcmp.lt.s32.totalorder %v25, 0
    %v28 = vsub.s32 0, %v25
    %v29 = vsel %vm27, %v28, %v25
    %v30 = vshrl.u32 %v29, 7
    %v31 = vand.u32 %v29, 127
    %v32 = vsub.s32 0, %v31
    %v33 = vsel %vm27, %v32, %v31
    %vm34 = vcmp.lt.s32.totalorder %v26, 0
    %v35 = vsub.s32 0, %v26
    %v36 = vsel %vm34, %v35, %v26
    %v37 = vshrl.u32 %v36, 7
    %v38 = vand.u32 %v36, 127
    %v39 = vsub.s32 0, %v38
    %v40 = vsel %vm34, %v39, %v38
    %vm41 = vcmp.ne.s32.totalorder %v33, 0
    %vm42 = vcmp.ne.s32.totalorder %v40, 0
    %vm43 = vcmp.lt.s32.totalorder %v33, 0
    %vm44 = vcmp.lt.s32.totalorder %v40, 0
    %vm45 = vmand %vm43, %vm41
    %vm46 = vmand %vm44, %vm42
    %v47 = vadd.s32 %v33, 128
    %v48 = vadd.s32 %v40, 128
    %v49 = vsel %vm45, %v47, %v33
    %v50 = vsel %vm46, %v48, %v40
    %vm51 = vcmp.ge.s32.totalorder %v49, 2
    %vm52 = vcmp.ge.s32.totalorder %v50, 2
    %53 = vrot.lane.b32.xlu0 %v19, 2
    %v54 = vpop.permute.xlu0 %53
    %55 = vrot.lane.b32.xlu0 %v20, 2
    %v56 = vpop.permute.xlu0 %55
    %57 = vrot.lane.b32.xlu0 %v22, 2
    %v58 = vpop.permute.xlu0 %57
    %59 = vrot.lane.b32.xlu0 %v23, 2
    %v60 = vpop.permute.xlu0 %59
    %vm61 = vcmp.lt.s32.totalorder %v25, 2
    %v62 = vsel %vm61, %v54, %v58
    %v63 = vsel %vm61, %v56, %v60
    %v64 = vsel %vm61, %v58, %v54
    %v65 = vsel %vm61, %v60, %v56
    %v66 = vsel %vm51, %v64, 0.0
    %v67 = vsel %vm52, %v62, 0.0
    %v68 = vsel %vm51, %v65, 0.0
    %v69 = vsel %vm52, %v63, 0.0
    %vm70 = vcmp.lt.s32.totalorder %v49, 126
    %vm71 = vcmp.lt.s32.totalorder %v50, 126
    %72 = vrot.lane.b32.xlu0 %v19, 126
    %v73 = vpop.permute.xlu0 %72
    %74 = vrot.lane.b32.xlu0 %v20, 126
    %v75 = vpop.permute.xlu0 %74
    %76 = vrot.lane.b32.xlu0 %v22, 126
    %v77 = vpop.permute.xlu0 %76
    %78 = vrot.lane.b32.xlu0 %v23, 126
    %v79 = vpop.permute.xlu0 %78
    %vm80 = vcmp.lt.s32.totalorder %v25, 126
    %v81 = vsel %vm80, %v73, %v77
    %v82 = vsel %vm80, %v75, %v79
    %v83 = vsel %vm80, %v77, %v73
    %v84 = vsel %vm80, %v79, %v75
    %v85 = vsel %vm70, %v81, 0.0
    %v86 = vsel %vm71, %v83, 0.0
    %v87 = vsel %vm70, %v82, 0.0
    %v88 = vsel %vm71, %v84, 0.0
    %v89 = vld [vmem:[%s1] sm:$0xff]
    %v90 = vld [vmem:[%s1 + $0x8] sm:$0xff]
    %v91 = vld [vmem:[%s1 + $0x10] sm:$0xff]
    %v92 = vld [vmem:[%s1 + $0x18] sm:$0xff]
    %vm93 = vcmask 392192
    %v95 = vsel %vm93, %v89, 0
    %v98 = vsel %vm93, %v90, 0
    %v101 = vsel %vm93, %v91, 0
    %v104 = vsel %vm93, %v92, 0
    %106 = vmatprep.subr.mxu0 %v67
    %107 = vmatpush1.msra.mxu0 %v66
    %108 = vmatprep.subr.mxu0 %v69
    %109 = vmatpush1.msra.mxu0 %v68
    %110 = vmatprep.subr.mxu0 %v22
    %111 = vmatpush1.msra.mxu0 %v19
    %112 = vmatprep.subr.mxu0 %v23
    %113 = vmatpush1.msra.mxu0 %v20
    %114 = vmatprep.subr.mxu0 %v86
    %115 = vmatpush1.msra.mxu0 %v85
    %116 = vmatprep.subr.mxu0 %v88
    %117 = vmatpush1.msra.mxu0 %v87
    %118 = vmatprep.subr.mxu0 0.0
    %119 = vmatpush1.msra.mxu0 0.0
    %120 = vmatprep.subr.mxu0 0.0
    %121 = vmatpush1.msra.mxu0 0.0
    %122 = vmatprep.subr.mxu0 0.0
    %123 = vmatpush1.msra.mxu0 0.0
    %124 = vmatprep.subr.mxu0 0.0
    %125 = vmatpush1.msra.mxu0 0.0
    %126 = vmatprep.subr.mxu0 0.0
    %127 = vmatpush1.msra.mxu0 0.0
    %128 = vmatprep.subr.mxu0 0.0
    %129 = vmatpush1.msra.mxu0 0.0
    %130 = vmatprep.subr.mxu0 0.0
    %131 = vmatpush1.msra.mxu0 0.0
    %132 = vmatprep.subr.mxu0 0.0
    %133 = vmatpush1.msra.mxu0 0.0
    %134 = vmatprep.subr.mxu0 0.0
    %135 = vmatpush1.msra.mxu0 0.0
    %136 = vmatprep.subr.mxu0 0.0
    %137 = vmatpush1.msra.mxu0 0.0
    %138 = vmatprep.subr.mxu0 0.0
    %139 = vmatpush1.msra.mxu0 0.0
    %140 = vmatprep.subr.mxu0 0.0
    %141 = vmatpush1.msra.mxu0 0.0
    %142 = vmatprep.subr.mxu0 0.0
    %143 = vmatpush1.msra.mxu0 0.0
    %144 = vmatprep.subr.mxu0 0.0
    %145 = vmatpush1.msra.mxu0 0.0
    %146 = vmatprep.subr.mxu0 0.0
    %147 = vmatpush1.msra.mxu0 0.0
    %148 = vmatprep.subr.mxu0 0.0
    %149 = vmatpush1.msra.mxu0 0.0
    %150 = vmatprep.subr.mxu0 0.0
    %151 = vmatpush1.msra.mxu0 0.0
    %152 = vmatprep.subr.mxu0 0.0
    %153 = vmatpush1.msra.mxu0 0.0
    %154 = vmatprep.subr.mxu0 0.0
    %155 = vmatpush1.msra.mxu0 0.0
    %156 = vmatprep.subr.mxu0 0.0
    %157 = vmatpush1.msra.mxu0 0.0
    %158 = vmatprep.subr.mxu0 0.0
    %159 = vmatpush1.msra.mxu0 0.0
    %160 = vmatprep.subr.mxu0 0.0
    %161 = vmatpush1.msra.mxu0 0.0
    %162 = vmatprep.subr.mxu0 0.0
    %163 = vmatpush1.msra.mxu0 0.0
    %164 = vmatprep.subr.mxu0 0.0
    %165 = vmatpush1.msra.mxu0 0.0
    %166 = vmatprep.subr.mxu0 0.0
    %167 = vmatpush1.msra.mxu0 0.0
    %168 = vmatprep.subr.mxu0 0.0
    %169 = vmatpush1.msra.mxu0 0.0
    %170 = vmatprep.mubr.f32.mxu0 0.0
    %171 = vmatmul.mubr.f32.gmra.mrb[0].mxu0 %v95
    %v172 = vpop.f32.mrb[0].mxu0
    %v173 = vadd.f32 0.0, %v172
    %v174 = vpop.f32.mrb[0].mxu0
    %v175 = vadd.f32 0.0, %v174
    %176 = vmatprep.mubr.f32.mxu0 0.0
    %177 = vmatmul.mubr.f32.gmra.mrb[0].mxu0 %v98
    %v178 = vpop.f32.mrb[0].mxu0
    %v179 = vadd.f32 0.0, %v178
    %v180 = vpop.f32.mrb[0].mxu0
    %v181 = vadd.f32 0.0, %v180
    %182 = vmatprep.mubr.f32.mxu0 0.0
    %183 = vmatmul.mubr.f32.gmra.mrb[0].mxu0 %v101
    %v184 = vpop.f32.mrb[0].mxu0
    %v185 = vadd.f32 0.0, %v184
    %v186 = vpop.f32.mrb[0].mxu0
    %v187 = vadd.f32 0.0, %v186
    %188 = vmatprep.mubr.f32.mxu0 0.0
    %189 = vmatmul.mubr.f32.gmra.mrb[0].mxu0 %v104
    %v190 = vpop.f32.mrb[0].mxu0
    %v191 = vadd.f32 0.0, %v190
    %v192 = vpop.f32.mrb[0].mxu0
    %v193 = vadd.f32 0.0, %v192
    %194 = vdwg.mxu0
    %s195 = sld [smem:[#allocation2]]
    %v196 = vld [vmem:[%s2] sm:$0xff]
    %v197 = vld [vmem:[%s2 + $0x8] sm:$0xff]
    %v198 = vld [vmem:[%s2 + $0x10] sm:$0xff]
    %v199 = vld [vmem:[%s2 + $0x18] sm:$0xff]
    %201 = vset.pattern.permute.xlu0 0
    %202 = vperm.xlu0 %201, %v196
    %v203 = vpop.permute.xlu0 %202
    %206 = vset.pattern.permute.xlu0 0
    %207 = vperm.xlu0 %206, %v197
    %v208 = vpop.permute.xlu0 %207
    %211 = vset.pattern.permute.xlu0 0
    %212 = vperm.xlu0 %211, %v198
    %v213 = vpop.permute.xlu0 %212
    %216 = vset.pattern.permute.xlu0 0
    %217 = vperm.xlu0 %216, %v199
    %v218 = vpop.permute.xlu0 %217
    %v220 = vmul.f32 %v203, %v173
    %v221 = vmul.f32 %v208, %v179
    %v222 = vmul.f32 %v213, %v185
    %v223 = vmul.f32 %v218, %v191
    %224 = vset.pattern.permute.xlu0 1
    %225 = vperm.xlu0 %224, %v196
    %v226 = vpop.permute.xlu0 %225
    %228 = vset.pattern.permute.xlu0 1
    %229 = vperm.xlu0 %228, %v197
    %v230 = vpop.permute.xlu0 %229
    %232 = vset.pattern.permute.xlu0 1
    %233 = vperm.xlu0 %232, %v198
    %v234 = vpop.permute.xlu0 %233
    %236 = vset.pattern.permute.xlu0 1
    %237 = vperm.xlu0 %236, %v199
    %v238 = vpop.permute.xlu0 %237
    %v240 = vadd.f32 %v220, %v226
    %v241 = vadd.f32 %v221, %v230
    %v242 = vadd.f32 %v222, %v234
    %v243 = vadd.f32 %v223, %v238
    %vm244 = vcmp.ge.f32.partialorder %v240, 0.0
    %vm245 = vcmp.ge.f32.partialorder %v241, 0.0
    %vm246 = vcmp.ge.f32.partialorder %v242, 0.0
    %vm247 = vcmp.ge.f32.partialorder %v243, 0.0
    %v248 = vstv %s195
    %v249 = vmul.f32 %v248, %v240
    %v250 = vmul.f32 %v248, %v241
    %v251 = vmul.f32 %v248, %v242
    %v252 = vmul.f32 %v248, %v243
    %v253 = vsel %vm244, %v240, %v249
    %v254 = vsel %vm245, %v241, %v250
    %v255 = vsel %vm246, %v242, %v251
    %v256 = vsel %vm247, %v243, %v252
    %v257 = vadd.f32 %v253, %v254
    %v258 = vadd.f32 %v257, %v255
    %v259 = vadd.f32 %v258, %v256
    %260 = vadd.xlane.f32.xlu0 %v259
    %v261 = vpop.xlane.xlu0 %260
    %v262 = vrot.slane %v261, 4
    %v263 = vadd.f32 %v261, %v262
    %v264 = vrot.slane %v263, 2
    %v265 = vadd.f32 %v263, %v264
    %v266 = vrot.slane %v265, 1
    %v267 = vadd.f32 %v265, %v266
    %s268 = vtos %v267
    %s269 = smul.f32 %s268, 0.00024414063
    %v270 = vmul.f32 %v253, %v253
    %v271 = vmul.f32 %v254, %v254
    %v272 = vmul.f32 %v255, %v255
    %v273 = vmul.f32 %v256, %v256
    %v274 = vadd.f32 %v270, %v271
    %v275 = vadd.f32 %v274, %v272
    %v276 = vadd.f32 %v275, %v273
    %277 = vadd.xlane.f32.xlu0 %v276
    %v278 = vpop.xlane.xlu0 %277
    %v279 = vrot.slane %v278, 4
    %v280 = vadd.f32 %v278, %v279
    %v281 = vrot.slane %v280, 2
    %v282 = vadd.f32 %v280, %v281
    %v283 = vrot.slane %v282, 1
    %v284 = vadd.f32 %v282, %v283
    %s285 = vtos %v284
    %s286 = smul.f32 %s285, 0.00024414063
    %s287 = smul.f32 %s269, %s269
    %s288 = ssub.f32 %s286, %s287
    %s289 = sadd.f32 %s288, 1e-08
    %v290 = vstv %s289
    %v291 = vrsqrt.pop %v290
    %s292 = vtos %v291
    %v293 = vstv %s269
    %v294 = vsub.f32 %v253, %v293
    %v295 = vsub.f32 %v254, %v293
    %v296 = vsub.f32 %v255, %v293
    %v297 = vsub.f32 %v256, %v293
    %v298 = vstv %s292
    %v299 = vmul.f32 %v294, %v298
    %v300 = vmul.f32 %v295, %v298
    %v301 = vmul.f32 %v296, %v298
    %v302 = vmul.f32 %v297, %v298
    %303 = vset.pattern.permute.xlu0 2
    %304 = vperm.xlu0 %303, %v196
    %v305 = vpop.permute.xlu0 %304
    %307 = vset.pattern.permute.xlu0 2
    %308 = vperm.xlu0 %307, %v197
    %v309 = vpop.permute.xlu0 %308
    %311 = vset.pattern.permute.xlu0 2
    %312 = vperm.xlu0 %311, %v198
    %v313 = vpop.permute.xlu0 %312
    %315 = vset.pattern.permute.xlu0 2
    %316 = vperm.xlu0 %315, %v199
    %v317 = vpop.permute.xlu0 %316
    %v319 = vmul.f32 %v305, %v299
    %v320 = vmul.f32 %v309, %v300
    %v321 = vmul.f32 %v313, %v301
    %v322 = vmul.f32 %v317, %v302
    %323 = vset.pattern.permute.xlu0 3
    %324 = vperm.xlu0 %323, %v196
    %v325 = vpop.permute.xlu0 %324
    %327 = vset.pattern.permute.xlu0 3
    %328 = vperm.xlu0 %327, %v197
    %v329 = vpop.permute.xlu0 %328
    %331 = vset.pattern.permute.xlu0 3
    %332 = vperm.xlu0 %331, %v198
    %v333 = vpop.permute.xlu0 %332
    %335 = vset.pattern.permute.xlu0 3
    %336 = vperm.xlu0 %335, %v199
    %v337 = vpop.permute.xlu0 %336
    %v339 = vadd.f32 %v319, %v325
    %v340 = vadd.f32 %v320, %v329
    %v341 = vadd.f32 %v321, %v333
    %v342 = vadd.f32 %v322, %v337
    %343 = vst [vmem:[#allocation3] sm:$0xff] %v339
    %344 = vst [vmem:[#allocation3 + $0x8] sm:$0xff] %v340
    %345 = vst [vmem:[#allocation3 + $0x10] sm:$0xff] %v341
    %346 = vst [vmem:[#allocation3 + $0x18] sm:$0xff] %v342
    %s347 = scalar_lea.vmem %s2, 32
    %v348 = vld [vmem:[%s347] sm:$0xff]
    %v349 = vld [vmem:[%s347 + $0x8] sm:$0xff]
    %v350 = vld [vmem:[%s347 + $0x10] sm:$0xff]
    %v351 = vld [vmem:[%s347 + $0x18] sm:$0xff]
    %353 = vset.pattern.permute.xlu0 0
    %354 = vperm.xlu0 %353, %v348
    %v355 = vpop.permute.xlu0 %354
    %358 = vset.pattern.permute.xlu0 0
    %359 = vperm.xlu0 %358, %v349
    %v360 = vpop.permute.xlu0 %359
    %363 = vset.pattern.permute.xlu0 0
    %364 = vperm.xlu0 %363, %v350
    %v365 = vpop.permute.xlu0 %364
    %368 = vset.pattern.permute.xlu0 0
    %369 = vperm.xlu0 %368, %v351
    %v370 = vpop.permute.xlu0 %369
    %v372 = vmul.f32 %v355, %v175
    %v373 = vmul.f32 %v360, %v181
    %v374 = vmul.f32 %v365, %v187
    %v375 = vmul.f32 %v370, %v193
    %376 = vset.pattern.permute.xlu0 1
    %377 = vperm.xlu0 %376, %v348
    %v378 = vpop.permute.xlu0 %377
    %380 = vset.pattern.permute.xlu0 1
    %381 = vperm.xlu0 %380, %v349
    %v382 = vpop.permute.xlu0 %381
    %384 = vset.pattern.permute.xlu0 1
    %385 = vperm.xlu0 %384, %v350
    %v386 = vpop.permute.xlu0 %385
    %388 = vset.pattern.permute.xlu0 1
    %389 = vperm.xlu0 %388, %v351
    %v390 = vpop.permute.xlu0 %389
    %v392 = vadd.f32 %v372, %v378
    %v393 = vadd.f32 %v373, %v382
    %v394 = vadd.f32 %v374, %v386
    %v395 = vadd.f32 %v375, %v390
    %vm396 = vcmp.ge.f32.partialorder %v392, 0.0
    %vm397 = vcmp.ge.f32.partialorder %v393, 0.0
    %vm398 = vcmp.ge.f32.partialorder %v394, 0.0
    %vm399 = vcmp.ge.f32.partialorder %v395, 0.0
    %v400 = vmul.f32 %v248, %v392
    %v401 = vmul.f32 %v248, %v393
    %v402 = vmul.f32 %v248, %v394
    %v403 = vmul.f32 %v248, %v395
    %v404 = vsel %vm396, %v392, %v400
    %v405 = vsel %vm397, %v393, %v401
    %v406 = vsel %vm398, %v394, %v402
    %v407 = vsel %vm399, %v395, %v403
    %v408 = vadd.f32 %v404, %v405
    %v409 = vadd.f32 %v408, %v406
    %v410 = vadd.f32 %v409, %v407
    %411 = vadd.xlane.f32.xlu0 %v410
    %v412 = vpop.xlane.xlu0 %411
    %v413 = vrot.slane %v412, 4
    %v414 = vadd.f32 %v412, %v413
    %v415 = vrot.slane %v414, 2
    %v416 = vadd.f32 %v414, %v415
    %v417 = vrot.slane %v416, 1
    %v418 = vadd.f32 %v416, %v417
    %s419 = vtos %v418
    %s420 = smul.f32 %s419, 0.00024414063
    %v421 = vmul.f32 %v404, %v404
    %v422 = vmul.f32 %v405, %v405
    %v423 = vmul.f32 %v406, %v406
    %v424 = vmul.f32 %v407, %v407
    %v425 = vadd.f32 %v421, %v422
    %v426 = vadd.f32 %v425, %v423
    %v427 = vadd.f32 %v426, %v424
    %428 = vadd.xlane.f32.xlu0 %v427
    %v429 = vpop.xlane.xlu0 %428
    %v430 = vrot.slane %v429, 4
    %v431 = vadd.f32 %v429, %v430
    %v432 = vrot.slane %v431, 2
    %v433 = vadd.f32 %v431, %v432
    %v434 = vrot.slane %v433, 1
    %v435 = vadd.f32 %v433, %v434
    %s436 = vtos %v435
    %s437 = smul.f32 %s436, 0.00024414063
    %s438 = smul.f32 %s420, %s420
    %s439 = ssub.f32 %s437, %s438
    %s440 = sadd.f32 %s439, 1e-08
    %v441 = vstv %s440
    %v442 = vrsqrt.pop %v441
    %s443 = vtos %v442
    %v444 = vstv %s420
    %v445 = vsub.f32 %v404, %v444
    %v446 = vsub.f32 %v405, %v444
    %v447 = vsub.f32 %v406, %v444
    %v448 = vsub.f32 %v407, %v444
    %v449 = vstv %s443
    %v450 = vmul.f32 %v445, %v449
    %v451 = vmul.f32 %v446, %v449
    %v452 = vmul.f32 %v447, %v449
    %v453 = vmul.f32 %v448, %v449
    %454 = vset.pattern.permute.xlu0 2
    %455 = vperm.xlu0 %454, %v348
    %v456 = vpop.permute.xlu0 %455
    %458 = vset.pattern.permute.xlu0 2
    %459 = vperm.xlu0 %458, %v349
    %v460 = vpop.permute.xlu0 %459
    %462 = vset.pattern.permute.xlu0 2
    %463 = vperm.xlu0 %462, %v350
    %v464 = vpop.permute.xlu0 %463
    %466 = vset.pattern.permute.xlu0 2
    %467 = vperm.xlu0 %466, %v351
    %v468 = vpop.permute.xlu0 %467
    %v470 = vmul.f32 %v456, %v450
    %v471 = vmul.f32 %v460, %v451
    %v472 = vmul.f32 %v464, %v452
    %v473 = vmul.f32 %v468, %v453
    %474 = vset.pattern.permute.xlu0 3
    %475 = vperm.xlu0 %474, %v348
    %v476 = vpop.permute.xlu0 %475
    %478 = vset.pattern.permute.xlu0 3
    %479 = vperm.xlu0 %478, %v349
    %v480 = vpop.permute.xlu0 %479
    %482 = vset.pattern.permute.xlu0 3
    %483 = vperm.xlu0 %482, %v350
    %v484 = vpop.permute.xlu0 %483
    %486 = vset.pattern.permute.xlu0 3
    %487 = vperm.xlu0 %486, %v351
    %v488 = vpop.permute.xlu0 %487
    %v490 = vadd.f32 %v470, %v476
    %v491 = vadd.f32 %v471, %v480
    %v492 = vadd.f32 %v472, %v484
    %v493 = vadd.f32 %v473, %v488
    %s494 = scalar_lea.vmem [#allocation3], 32
    %495 = vst [vmem:[%s494] sm:$0xff] %v490
    %496 = vst [vmem:[%s494 + $0x8] sm:$0xff] %v491
    %497 = vst [vmem:[%s494 + $0x10] sm:$0xff] %v492
    %498 = vst [vmem:[%s494 + $0x18] sm:$0xff] %v493
    // Predicated region
    $region18: #{tpu_custom_call.1} parent=1 // pred_check
      _
    $region19: #{tpu_custom_call.1} parent=1 // pred_check_branch
      %500 = sbr.rel (0) target = $region21
    $region20: #{tpu_custom_call.1} parent=1 // pred_region
      %s502 = ssub.s32 1024, 1024
      %503 = vsyncadd [#allocation4], %s502
      %s504 = sshll.u32 [#allocation3], 4
      %s505 = int_to_ptr.vmem [resolvable:$true] %s504
      %510 = dma.vmem_to_hbm [thread:$0]  %s505, 1024, %s4, [#allocation4], 128, 128, 8
    $region21: #{tpu_custom_call.1} parent=1 // pred_fallthru
      _
    // Predicated region
    $region22: #{tpu_custom_call.1} parent=1 // pred_check
      _
    $region23: #{tpu_custom_call.1} parent=1 // pred_check_branch
      %512 = sbr.rel (0) target = $region25
    $region24: #{tpu_custom_call.1} parent=1 // pred_region
      %513 = dma.done [#allocation4], 1024
    $region25: #{tpu_custom_call.1} parent=1 // pred_fallthru
      _
    %514 = vsyncpa [#allocation4], 1

</llo_original>
